<compile_context>
chip_gen: v5e
topology: v5e:2x2
jax: 0.10.0
libtpu: 0.0.40
codegen_flags: <defaults>
</compile_context>

<pallas_src>
import jax
import jax.numpy as jnp
from jax.experimental import pallas as pl
from jax.experimental.pallas import tpu as pltpu

LANE = 128  # TPU lane width


def _round_up(n, m):
    return ((n + m - 1) // m) * m


def _mlp_kernel(x_ref, w1_ref, b1_ref, w2_ref, b2_ref, w3_ref, b3_ref, o_ref):
    # x_ref: [TM, D_in] (f32)   w*_ref: [in, out] (bf16, hidden padded to 128)
    # b*_ref: [1, out] (f32)    o_ref: [TM, D_out] (f32, real width)
    x = x_ref[...].astype(jnp.bfloat16)

    # fc1 + ReLU (dropout1 == identity in eval mode)
    h1 = jnp.dot(x, w1_ref[...], preferred_element_type=jnp.float32) + b1_ref[...]
    h1 = jnp.maximum(h1, 0.0)

    # fc2 + ReLU (dropout2 == identity in eval mode)
    h2 = jnp.dot(h1.astype(jnp.bfloat16), w2_ref[...],
                 preferred_element_type=jnp.float32) + b2_ref[...]
    h2 = jnp.maximum(h2, 0.0)

    # fc3 (no activation)
    out = jnp.dot(h2.astype(jnp.bfloat16), w3_ref[...],
                  preferred_element_type=jnp.float32) + b3_ref[...]
    o_ref[...] = out.astype(o_ref.dtype)


def _pad2(a, rows, cols, dtype):
    a = a.astype(dtype)
    return jnp.pad(a, ((0, rows - a.shape[0]), (0, cols - a.shape[1])))


@jax.jit
def simple_nn_forward(x, w1, b1, w2, b2, w3, b3):
    """Forward pass of SimpleNN.

    x: [B, ...] — flattened to [B, input_dim] (mirrors x.view(x.size(0), -1)).
    w*: [in_features, out_features] (f32), b*: [out_features] (f32).
    Returns [B, output_dim] float32.
    """
    B = x.shape[0]
    x2d = x.reshape(B, -1)
    rows, d_in = x2d.shape
    hidden = w1.shape[1]
    d_out = w3.shape[1]

    # Lane-dense padded hidden width; output kept at its real width.
    h_pad = _round_up(hidden, LANE)

    # Batch tile: sublane-aligned, capped at 2048 rows, and chosen so the grid
    # has >= 2 steps whenever rows allow it (v7x megacore sharding).
    TM_MAX = 2048
    TM = max(8, min(TM_MAX, _round_up(pl.cdiv(rows, 2), 8)))
    grid = (pl.cdiv(rows, TM),)   # ragged last tile handled by Pallas masking

    # Weights as bf16, hidden dim zero-padded to 128 lanes; biases stay f32.
    # Zero padding is numerically exact through the ReLU chain.
    w1p = _pad2(w1, d_in, h_pad, jnp.bfloat16)
    w2p = _pad2(w2, h_pad, h_pad, jnp.bfloat16)
    w3p = _pad2(w3, h_pad, d_out, jnp.bfloat16)
    b1p = _pad2(b1.reshape(1, -1), 1, h_pad, jnp.float32)
    b2p = _pad2(b2.reshape(1, -1), 1, h_pad, jnp.float32)
    b3p = _pad2(b3.reshape(1, -1), 1, d_out, jnp.float32)

    resident = lambda a: pl.BlockSpec(a.shape, lambda i: (0,) * a.ndim)

    flops = 2 * rows * (d_in * h_pad + h_pad * h_pad + h_pad * d_out)
    bytes_accessed = (x2d.size * x2d.dtype.itemsize
                      + w1p.size * 2 + w2p.size * 2 + w3p.size * 2
                      + (b1p.size + b2p.size + b3p.size) * 4
                      + rows * d_out * 4)

    out = pl.pallas_call(
        _mlp_kernel,
        out_shape=jax.ShapeDtypeStruct((rows, d_out), jnp.float32),
        grid=grid,
        in_specs=[
            pl.BlockSpec((TM, d_in), lambda i: (i, 0)),   # x: tiled over batch
            resident(w1p), resident(b1p),                 # weights/biases resident
            resident(w2p), resident(b2p),
            resident(w3p), resident(b3p),
        ],
        out_specs=pl.BlockSpec((TM, d_out), lambda i: (i, 0)),
        compiler_params=pltpu.CompilerParams(
            dimension_semantics=("parallel",),  # shard batch tiles across TCs on v7x
        ),
        cost_estimate=pl.CostEstimate(
            flops=flops, transcendentals=0, bytes_accessed=bytes_accessed),
    )(x2d, w1p, b1p, w2p, b2p, w3p, b3p)

    return out


def _xavier_uniform(key, fan_in, fan_out):
    bound = jnp.sqrt(6.0 / (fan_in + fan_out))
    return jax.random.uniform(key, (fan_in, fan_out), jnp.float32, -bound, bound)


def _linear_bias(key, fan_in, fan_out):
    bound = 1.0 / jnp.sqrt(float(fan_in))
    return jax.random.uniform(key, (fan_out,), jnp.float32, -bound, bound)


def init_params(key, input_dim, hidden_dim, output_dim):
    k = jax.random.split(key, 6)
    w1 = _xavier_uniform(k[0], input_dim, hidden_dim)
    b1 = _linear_bias(k[1], input_dim, hidden_dim)
    w2 = _xavier_uniform(k[2], hidden_dim, hidden_dim)
    b2 = _linear_bias(k[3], hidden_dim, hidden_dim)
    w3 = _xavier_uniform(k[4], hidden_dim, output_dim)
    b3 = _linear_bias(k[5], hidden_dim, output_dim)
    return w1, b1, w2, b2, w3, b3


if __name__ == "__main__":
    key = jax.random.PRNGKey(0)
    k_x, k_p = jax.random.split(key)

    batch, input_dim, hidden_dim, output_dim = 8, 64, 32, 16
    x = jax.random.normal(k_x, (batch, input_dim), jnp.float32)
    params = init_params(k_p, input_dim, hidden_dim, output_dim)

    out = simple_nn_forward(x, *params)
    jax.block_until_ready(out)

    # sanity: reference in plain JAX (eval-mode dropout == identity).
    # Loose tolerances because the kernel uses bf16 MXU operands (f32 accum).
    w1, b1, w2, b2, w3, b3 = params
    ref = jnp.maximum(x @ w1 + b1, 0.0)
    ref = jnp.maximum(ref @ w2 + b2, 0.0)
    ref = ref @ w3 + b3
    assert out.shape == (batch, output_dim)
    assert jnp.allclose(out, ref, atol=5e-2, rtol=5e-2), (
        float(jnp.max(jnp.abs(out - ref))))

    print("KERNEL_OK")
</pallas_src>

<mosaic_0001>
module attributes {stable_mosaic.version = 11 : i64} {
  func.func @_mlp_kernel(%arg0: i32, %arg1: memref<8x64xf32, #tpu.memory_space<vmem>>, %arg2: memref<64x128xbf16, #tpu.memory_space<vmem>>, %arg3: memref<1x128xf32, #tpu.memory_space<vmem>>, %arg4: memref<128x128xbf16, #tpu.memory_space<vmem>>, %arg5: memref<1x128xf32, #tpu.memory_space<vmem>>, %arg6: memref<128x16xbf16, #tpu.memory_space<vmem>>, %arg7: memref<1x16xf32, #tpu.memory_space<vmem>>, %arg8: memref<8x16xf32, #tpu.memory_space<vmem>>) attributes {dimension_semantics = [#tpu.dimension_semantics<parallel>], iteration_bounds = array<i64: 1>, scalar_prefetch = 0 : i64, scratch_operands = 0 : i64, tpu.core_type = #tpu.core_type<tc>, window_params = [{transform_indices = @transform_0, window_bounds = array<i64: 8, 64>}, {pipeline_mode = #tpu.pipeline_mode<synchronous>, transform_indices = @transform_1, window_bounds = array<i64: 64, 128>}, {pipeline_mode = #tpu.pipeline_mode<synchronous>, transform_indices = @transform_2, window_bounds = array<i64: 1, 128>}, {pipeline_mode = #tpu.pipeline_mode<synchronous>, transform_indices = @transform_3, window_bounds = array<i64: 128, 128>}, {pipeline_mode = #tpu.pipeline_mode<synchronous>, transform_indices = @transform_4, window_bounds = array<i64: 1, 128>}, {pipeline_mode = #tpu.pipeline_mode<synchronous>, transform_indices = @transform_5, window_bounds = array<i64: 128, 16>}, {pipeline_mode = #tpu.pipeline_mode<synchronous>, transform_indices = @transform_6, window_bounds = array<i64: 1, 16>}, {transform_indices = @transform_7, window_bounds = array<i64: 8, 16>}]} {
    %c0 = arith.constant 0 : index
    %c0_0 = arith.constant 0 : index
    %0 = vector.load %arg1[%c0, %c0_0] : memref<8x64xf32, #tpu.memory_space<vmem>>, vector<8x64xf32>
    %1 = arith.truncf %0 : vector<8x64xf32> to vector<8x64xbf16>
    %c0_1 = arith.constant 0 : index
    %c0_2 = arith.constant 0 : index
    %2 = vector.load %arg2[%c0_1, %c0_2] : memref<64x128xbf16, #tpu.memory_space<vmem>>, vector<64x128xbf16>
    %cst = arith.constant dense<0.000000e+00> : vector<8x128xf32>
    %3 = tpu.matmul %1, %2, %cst {dimension_numbers = #tpu.dot_dimension_numbers<[1], [0], [0], [1], [0, 0, 1, 1], [], []>} : vector<8x64xbf16>, vector<64x128xbf16>, vector<8x128xf32> -> vector<8x128xf32>
    %c0_3 = arith.constant 0 : index
    %c0_4 = arith.constant 0 : index
    %4 = vector.load %arg3[%c0_3, %c0_4] : memref<1x128xf32, #tpu.memory_space<vmem>>, vector<1x128xf32>
    %5 = vector.broadcast %4 : vector<1x128xf32> to vector<8x128xf32>
    %6 = arith.addf %3, %5 : vector<8x128xf32>
    %cst_5 = arith.constant 0.000000e+00 : f32
    %7 = vector.broadcast %cst_5 : f32 to vector<8x128xf32>
    %8 = arith.maximumf %6, %7 : vector<8x128xf32>
    %9 = arith.truncf %8 : vector<8x128xf32> to vector<8x128xbf16>
    %c0_6 = arith.constant 0 : index
    %c0_7 = arith.constant 0 : index
    %10 = vector.load %arg4[%c0_6, %c0_7] : memref<128x128xbf16, #tpu.memory_space<vmem>>, vector<128x128xbf16>
    %cst_8 = arith.constant dense<0.000000e+00> : vector<8x128xf32>
    %11 = tpu.matmul %9, %10, %cst_8 {dimension_numbers = #tpu.dot_dimension_numbers<[1], [0], [0], [1], [0, 0, 1, 1], [], []>} : vector<8x128xbf16>, vector<128x128xbf16>, vector<8x128xf32> -> vector<8x128xf32>
    %c0_9 = arith.constant 0 : index
    %c0_10 = arith.constant 0 : index
    %12 = vector.load %arg5[%c0_9, %c0_10] : memref<1x128xf32, #tpu.memory_space<vmem>>, vector<1x128xf32>
    %13 = vector.broadcast %12 : vector<1x128xf32> to vector<8x128xf32>
    %14 = arith.addf %11, %13 : vector<8x128xf32>
    %cst_11 = arith.constant 0.000000e+00 : f32
    %15 = vector.broadcast %cst_11 : f32 to vector<8x128xf32>
    %16 = arith.maximumf %14, %15 : vector<8x128xf32>
    %17 = arith.truncf %16 : vector<8x128xf32> to vector<8x128xbf16>
    %c0_12 = arith.constant 0 : index
    %c0_13 = arith.constant 0 : index
    %18 = vector.load %arg6[%c0_12, %c0_13] : memref<128x16xbf16, #tpu.memory_space<vmem>>, vector<128x16xbf16>
    %cst_14 = arith.constant dense<0.000000e+00> : vector<8x16xf32>
    %19 = tpu.matmul %17, %18, %cst_14 {dimension_numbers = #tpu.dot_dimension_numbers<[1], [0], [0], [1], [0, 0, 1, 1], [], []>} : vector<8x128xbf16>, vector<128x16xbf16>, vector<8x16xf32> -> vector<8x16xf32>
    %c0_15 = arith.constant 0 : index
    %c0_16 = arith.constant 0 : index
    %20 = vector.load %arg7[%c0_15, %c0_16] : memref<1x16xf32, #tpu.memory_space<vmem>>, vector<1x16xf32>
    %21 = vector.broadcast %20 : vector<1x16xf32> to vector<8x16xf32>
    %22 = arith.addf %19, %21 : vector<8x16xf32>
    %c0_17 = arith.constant 0 : index
    %c0_18 = arith.constant 0 : index
    %23 = vector.load %arg8[%c0_17, %c0_18] : memref<8x16xf32, #tpu.memory_space<vmem>>, vector<8x16xf32>
    tpu.vector_store %arg8[%c0_17, %c0_18], %22 {strides = array<i32>} : memref<8x16xf32, #tpu.memory_space<vmem>>, vector<8x16xf32>,
    return
  }
  func.func @transform_0(%arg0: i32) -> (i32, i32) {
    %c0_i32 = arith.constant 0 : i32
    %c0_i32_0 = arith.constant 0 : i32
    return %arg0, %c0_i32 : i32, i32
  }
  func.func @transform_1(%arg0: i32) -> (i32, i32) {
    %c0_i32 = arith.constant 0 : i32
    %c0_i32_0 = arith.constant 0 : i32
    %c0_i32_1 = arith.constant 0 : i32
    return %c0_i32, %c0_i32_0 : i32, i32
  }
  func.func @transform_2(%arg0: i32) -> (i32, i32) {
    %c0_i32 = arith.constant 0 : i32
    %c0_i32_0 = arith.constant 0 : i32
    %c0_i32_1 = arith.constant 0 : i32
    return %c0_i32, %c0_i32_0 : i32, i32
  }
  func.func @transform_3(%arg0: i32) -> (i32, i32) {
    %c0_i32 = arith.constant 0 : i32
    %c0_i32_0 = arith.constant 0 : i32
    %c0_i32_1 = arith.constant 0 : i32
    return %c0_i32, %c0_i32_0 : i32, i32
  }
  func.func @transform_4(%arg0: i32) -> (i32, i32) {
    %c0_i32 = arith.constant 0 : i32
    %c0_i32_0 = arith.constant 0 : i32
    %c0_i32_1 = arith.constant 0 : i32
    return %c0_i32, %c0_i32_0 : i32, i32
  }
  func.func @transform_5(%arg0: i32) -> (i32, i32) {
    %c0_i32 = arith.constant 0 : i32
    %c0_i32_0 = arith.constant 0 : i32
    %c0_i32_1 = arith.constant 0 : i32
    return %c0_i32, %c0_i32_0 : i32, i32
  }
  func.func @transform_6(%arg0: i32) -> (i32, i32) {
    %c0_i32 = arith.constant 0 : i32
    %c0_i32_0 = arith.constant 0 : i32
    %c0_i32_1 = arith.constant 0 : i32
    return %c0_i32, %c0_i32_0 : i32, i32
  }
  func.func @transform_7(%arg0: i32) -> (i32, i32) {
    %c0_i32 = arith.constant 0 : i32
    %c0_i32_0 = arith.constant 0 : i32
    return %arg0, %c0_i32 : i32, i32
  }
}

</mosaic_0001>

<llo_original>
// kernel: simple_nn_forward.1
$region0: #{simple_nn_forward.1}
  #allocation0 [shape = 'u32[]', space=smem, size = 0x4, offset = 0x4, fixed_abs, tag = 'smem constant byte address 0x4 - core index']
  #allocation1 [shape = 'u32[72,128]{1,0:T(1,128)}', space=vmem, size = 0x9000, scoped, tag = 'internal scratch']
  %s0 = inlined_call_operand.vmem [shape: f32[8,64], index: 0, kind: input, shape index: {}]
  %s1 = inlined_call_operand.vmem [shape: bf16[64,128], index: 1, kind: input, shape index: {}]
  %s2 = inlined_call_operand.vmem [shape: f32[1,128], index: 2, kind: input, shape index: {}]
  %s3 = inlined_call_operand.vmem [shape: bf16[128,128], index: 3, kind: input, shape index: {}]
  %s4 = inlined_call_operand.vmem [shape: f32[1,128], index: 4, kind: input, shape index: {}]
  %s5 = inlined_call_operand.vmem [shape: bf16[128,16], index: 5, kind: input, shape index: {}]
  %s6 = inlined_call_operand.vmem [shape: f32[1,16], index: 6, kind: input, shape index: {}]
  %s7 = inlined_call_operand.hbm [shape: f32[8,16], index: 7, kind: output, shape index: {}]
  %s8 = sld [smem:[#allocation0]]
  $region38: #{simple_nn_forward.1} parent=0
    _
  %s10 = ssub.s32 1, %s8
  %s11 = scalar_select 0, %s10, %s8
  $region1: #{simple_nn_forward.1} parent=0
    #allocation2 [shape = 'u8[4096]{0}', space=vmem, size = 0x1000, scoped, tag = 'output window, operand 0, single buffered']
    #allocation3 [shape = 's32[1]{0}', space=sflag, size = 0x4, scoped, tag = 'scoped memory for simple_nn_forward.1']
    %12 = vsyncpa [#allocation3], 0
    // Predicated region
    $region2: #{simple_nn_forward.1} parent=1 // pred_check
      _
    $region3: #{simple_nn_forward.1} parent=1 // pred_check_branch
      %14 = sbr.rel (0) target = $region5
    $region4: #{simple_nn_forward.1} parent=1 // pred_region
      _
    $region5: #{simple_nn_forward.1} parent=1 // pred_fallthru
      _
    // Predicated region
    $region6: #{simple_nn_forward.1} parent=1 // pred_check
      _
    $region7: #{simple_nn_forward.1} parent=1 // pred_check_branch
      %16 = sbr.rel (0) target = $region9
    $region8: #{simple_nn_forward.1} parent=1 // pred_region
      _
    $region9: #{simple_nn_forward.1} parent=1 // pred_fallthru
      _
    // Predicated region
    $region10: #{simple_nn_forward.1} parent=1 // pred_check
      _
    $region11: #{simple_nn_forward.1} parent=1 // pred_check_branch
      %18 = sbr.rel (0) target = $region13
    $region12: #{simple_nn_forward.1} parent=1 // pred_region
      _
    $region13: #{simple_nn_forward.1} parent=1 // pred_fallthru
      _
    // Predicated region
    $region14: #{simple_nn_forward.1} parent=1 // pred_check
      _
    $region15: #{simple_nn_forward.1} parent=1 // pred_check_branch
      %20 = sbr.rel (0) target = $region17
    $region16: #{simple_nn_forward.1} parent=1 // pred_region
      _
    $region17: #{simple_nn_forward.1} parent=1 // pred_fallthru
      _
    // Predicated region
    $region18: #{simple_nn_forward.1} parent=1 // pred_check
      _
    $region19: #{simple_nn_forward.1} parent=1 // pred_check_branch
      %22 = sbr.rel (0) target = $region21
    $region20: #{simple_nn_forward.1} parent=1 // pred_region
      _
    $region21: #{simple_nn_forward.1} parent=1 // pred_fallthru
      _
    // Predicated region
    $region22: #{simple_nn_forward.1} parent=1 // pred_check
      _
    $region23: #{simple_nn_forward.1} parent=1 // pred_check_branch
      %24 = sbr.rel (0) target = $region25
    $region24: #{simple_nn_forward.1} parent=1 // pred_region
      _
    $region25: #{simple_nn_forward.1} parent=1 // pred_fallthru
      _
    // Predicated region
    $region26: #{simple_nn_forward.1} parent=1 // pred_check
      _
    $region27: #{simple_nn_forward.1} parent=1 // pred_check_branch
      %26 = sbr.rel (0) target = $region29
    $region28: #{simple_nn_forward.1} parent=1 // pred_region
      _
    $region29: #{simple_nn_forward.1} parent=1 // pred_fallthru
      _
    %v28 = vld [vmem:[%s0] sm:$0xff]
    %v29 = vpack.c.bf16 %v28, %v28
    %v30 = vld [vmem:[%s1] sm:$0xf]
    %v31 = vld [vmem:[%s1 + $0x4] sm:$0xf]
    %v32 = vld [vmem:[%s1 + $0x8] sm:$0xf]
    %v33 = vld [vmem:[%s1 + $0xc] sm:$0xf]
    %v34 = vld [vmem:[%s1 + $0x10] sm:$0xf]
    %v35 = vld [vmem:[%s1 + $0x14] sm:$0xf]
    %v36 = vld [vmem:[%s1 + $0x18] sm:$0xf]
    %v37 = vld [vmem:[%s1 + $0x1c] sm:$0xf]
    %v38 = vld [vmem:[%s2] sm:$0x1]
    %v40 = vperm.slane %v38, 0
    %v50 = vunpack.c.l.b16 %v30
    %v51 = vunpack.c.l.b16 %v31
    %v52 = vunpack.c.l.b16 %v32
    %v53 = vunpack.c.l.b16 %v33
    %v54 = vunpack.c.l.b16 %v34
    %v55 = vunpack.c.l.b16 %v35
    %v56 = vunpack.c.l.b16 %v36
    %v57 = vunpack.c.l.b16 %v37
    %v58 = vpack.c.b16 %v51, %v50
    %v59 = vpack.c.b16 %v53, %v52
    %v60 = vpack.c.b16 %v55, %v54
    %v61 = vpack.c.b16 %v57, %v56
    %vm66 = vcmask 523264
    %v68 = vsel %vm66, %v29, 0
    %70 = vmatpush.bf16.msra.mxu0 0
    %71 = vmatpush.bf16.msra.mxu0 0
    %72 = vmatpush.bf16.msra.mxu0 0
    %73 = vmatpush.bf16.msra.mxu0 0
    %74 = vmatpush.bf16.msra.mxu0 %v61
    %75 = vmatpush.bf16.msra.mxu0 %v60
    %76 = vmatpush.bf16.msra.mxu0 %v59
    %77 = vmatpush.bf16.msra.mxu0 %v58
    %78 = vmatmul.bf16.gmra.mxu0 %v68
    %v79 = vpop.f32.mrf.mxu0
    %v80 = vadd.f32 %v40, %v79
    %v81 = vpop.f32.mrf.mxu0
    %82 = vdwg.mxu0
    %v83 = vmax.f32 %v80, 0.0
    %v84 = vpack.c.bf16 %v83, %v83
    %v85 = vld [vmem:[%s3] sm:$0xf]
    %v86 = vld [vmem:[%s3 + $0x4] sm:$0xf]
    %v87 = vld [vmem:[%s3 + $0x8] sm:$0xf]
    %v88 = vld [vmem:[%s3 + $0xc] sm:$0xf]
    %v89 = vld [vmem:[%s3 + $0x10] sm:$0xf]
    %v90 = vld [vmem:[%s3 + $0x14] sm:$0xf]
    %v91 = vld [vmem:[%s3 + $0x18] sm:$0xf]
    %v92 = vld [vmem:[%s3 + $0x1c] sm:$0xf]
    %v93 = vld [vmem:[%s3 + $0x20] sm:$0xf]
    %v94 = vld [vmem:[%s3 + $0x24] sm:$0xf]
    %v95 = vld [vmem:[%s3 + $0x28] sm:$0xf]
    %v96 = vld [vmem:[%s3 + $0x2c] sm:$0xf]
    %v97 = vld [vmem:[%s3 + $0x30] sm:$0xf]
    %v98 = vld [vmem:[%s3 + $0x34] sm:$0xf]
    %v99 = vld [vmem:[%s3 + $0x38] sm:$0xf]
    %v100 = vld [vmem:[%s3 + $0x3c] sm:$0xf]
    %v101 = vld [vmem:[%s4] sm:$0x1]
    %v103 = vperm.slane %v101, 0
    %v121 = vunpack.c.l.b16 %v85
    %v122 = vunpack.c.l.b16 %v86
    %v123 = vunpack.c.l.b16 %v87
    %v124 = vunpack.c.l.b16 %v88
    %v125 = vunpack.c.l.b16 %v89
    %v126 = vunpack.c.l.b16 %v90
    %v127 = vunpack.c.l.b16 %v91
    %v128 = vunpack.c.l.b16 %v92
    %v129 = vunpack.c.l.b16 %v93
    %v130 = vunpack.c.l.b16 %v94
    %v131 = vunpack.c.l.b16 %v95
    %v132 = vunpack.c.l.b16 %v96
    %v133 = vunpack.c.l.b16 %v97
    %v134 = vunpack.c.l.b16 %v98
    %v135 = vunpack.c.l.b16 %v99
    %v136 = vunpack.c.l.b16 %v100
    %v137 = vpack.c.b16 %v122, %v121
    %v138 = vpack.c.b16 %v124, %v123
    %v139 = vpack.c.b16 %v126, %v125
    %v140 = vpack.c.b16 %v128, %v127
    %v141 = vpack.c.b16 %v130, %v129
    %v142 = vpack.c.b16 %v132, %v131
    %v143 = vpack.c.b16 %v134, %v133
    %v144 = vpack.c.b16 %v136, %v135
    %153 = vmatpush.bf16.msra.mxu0 %v144
    %154 = vmatpush.bf16.msra.mxu0 %v143
    %155 = vmatpush.bf16.msra.mxu0 %v142
    %156 = vmatpush.bf16.msra.mxu0 %v141
    %157 = vmatpush.bf16.msra.mxu0 %v140
    %158 = vmatpush.bf16.msra.mxu0 %v139
    %159 = vmatpush.bf16.msra.mxu0 %v138
    %160 = vmatpush.bf16.msra.mxu0 %v137
    %161 = vmatmul.bf16.gmra.mxu0 %v84
    %v162 = vpop.f32.mrf.mxu0
    %v163 = vadd.f32 %v103, %v162
    %v164 = vpop.f32.mrf.mxu0
    %165 = vdwg.mxu0
    %v166 = vmax.f32 %v163, 0.0
    %v167 = vpack.c.bf16 %v166, %v166
    %v168 = vld [vmem:[%s5] sm:$0xf]
    %v169 = vld [vmem:[%s5 + $0x4] sm:$0xf]
    %v170 = vld [vmem:[%s5 + $0x8] sm:$0xf]
    %v171 = vld [vmem:[%s5 + $0xc] sm:$0xf]
    %v172 = vld [vmem:[%s5 + $0x10] sm:$0xf]
    %v173 = vld [vmem:[%s5 + $0x14] sm:$0xf]
    %v174 = vld [vmem:[%s5 + $0x18] sm:$0xf]
    %v175 = vld [vmem:[%s5 + $0x1c] sm:$0xf]
    %v176 = vld [vmem:[%s5 + $0x20] sm:$0xf]
    %v177 = vld [vmem:[%s5 + $0x24] sm:$0xf]
    %v178 = vld [vmem:[%s5 + $0x28] sm:$0xf]
    %v179 = vld [vmem:[%s5 + $0x2c] sm:$0xf]
    %v180 = vld [vmem:[%s5 + $0x30] sm:$0xf]
    %v181 = vld [vmem:[%s5 + $0x34] sm:$0xf]
    %v182 = vld [vmem:[%s5 + $0x38] sm:$0xf]
    %v183 = vld [vmem:[%s5 + $0x3c] sm:$0xf]
    %v184 = vld [vmem:[%s6] sm:$0x1]
    %v186 = vperm.slane %v184, 0
    %v204 = vunpack.c.l.b16 %v168
    %v205 = vunpack.c.l.b16 %v169
    %v206 = vunpack.c.l.b16 %v170
    %v207 = vunpack.c.l.b16 %v171
    %v208 = vunpack.c.l.b16 %v172
    %v209 = vunpack.c.l.b16 %v173
    %v210 = vunpack.c.l.b16 %v174
    %v211 = vunpack.c.l.b16 %v175
    %v212 = vunpack.c.l.b16 %v176
    %v213 = vunpack.c.l.b16 %v177
    %v214 = vunpack.c.l.b16 %v178
    %v215 = vunpack.c.l.b16 %v179
    %v216 = vunpack.c.l.b16 %v180
    %v217 = vunpack.c.l.b16 %v181
    %v218 = vunpack.c.l.b16 %v182
    %v219 = vunpack.c.l.b16 %v183
    %v220 = vpack.c.b16 %v205, %v204
    %v221 = vpack.c.b16 %v207, %v206
    %v222 = vpack.c.b16 %v209, %v208
    %v223 = vpack.c.b16 %v211, %v210
    %v224 = vpack.c.b16 %v213, %v212
    %v225 = vpack.c.b16 %v215, %v214
    %v226 = vpack.c.b16 %v217, %v216
    %v227 = vpack.c.b16 %v219, %v218
    %236 = vmatpush.bf16.msra.mxu0 %v227
    %237 = vmatpush.bf16.msra.mxu0 %v226
    %238 = vmatpush.bf16.msra.mxu0 %v225
    %239 = vmatpush.bf16.msra.mxu0 %v224
    %240 = vmatpush.bf16.msra.mxu0 %v223
    %241 = vmatpush.bf16.msra.mxu0 %v222
    %242 = vmatpush.bf16.msra.mxu0 %v221
    %243 = vmatpush.bf16.msra.mxu0 %v220
    %244 = vmatmul.bf16.gmra.mxu0 %v167
    %v245 = vpop.f32.mrf.mxu0
    %v246 = vadd.f32 %v186, %v245
    %v247 = vpop.f32.mrf.mxu0
    %248 = vdwg.mxu0
    %vm249 = vcmask 130048
    %250 = vst.msk [vmem:[#allocation2] sm:$0xff] %vm249, %v246
    // Predicated region
    $region30: #{simple_nn_forward.1} parent=1 // pred_check
      _
    $region31: #{simple_nn_forward.1} parent=1 // pred_check_branch
      %252 = sbr.rel (0) target = $region33
    $region32: #{simple_nn_forward.1} parent=1 // pred_region
      %254 = vsyncadd [#allocation3], 0
      %s256 = sshll.u32 [#allocation2], 4
      %s257 = int_to_ptr.vmem [resolvable:$true] %s256
      %s258 = sshll.u32 %s7, 4
      %s259 = int_to_ptr.hbm [resolvable:$true] %s258
      %261 = dma.vmem_to_hbm [thread:$0]  %s257, 128, %s259, [#allocation3]
    $region33: #{simple_nn_forward.1} parent=1 // pred_fallthru
      _
    // Predicated region
    $region34: #{simple_nn_forward.1} parent=1 // pred_check
      _
    $region35: #{simple_nn_forward.1} parent=1 // pred_check_branch
      %263 = sbr.rel (0) target = $region37
    $region36: #{simple_nn_forward.1} parent=1 // pred_region
      %265 = dma.done [#allocation3], 128
    $region37: #{simple_nn_forward.1} parent=1 // pred_fallthru
      _
    %266 = vsyncpa [#allocation3], 1

</llo_original>
